<compile_context>
chip_gen: v7x
topology: tpu7x:2x2x1
jax: 0.10.0
libtpu: 0.0.40
codegen_flags: <defaults>
</compile_context>

<pallas_src>
import functools
import math

import jax
import jax.numpy as jnp
from jax import lax
from jax.experimental import pallas as pl
from jax.experimental.pallas import tpu as pltpu

_NEG_BIG = -1e30                      # "minus infinity" without inf-inf NaNs
_VMEM_CAP = 48 * 1024 * 1024          # safe on every generation (v7x = 64 MiB physical)


def _arcface_kernel(emb_ref, w_ref, inv_ref, label_ref, out_ref,
                    m_sc, l_sc, tgt_sc, *, scale, margin, num_classes):
    """One (batch-tile, class-tile) step: ArcFace margin + online-softmax CE."""
    eps = 1e-8
    cos_m = math.cos(margin)
    sin_m = math.sin(margin)
    clip_hi = scale * (1.0 - eps)
    clip_lo = -clip_hi

    ci = pl.program_id(1)

    @pl.when(ci == 0)
    def _init():
        m_sc[...] = jnp.full(m_sc.shape, _NEG_BIG, jnp.float32)
        l_sc[...] = jnp.zeros(l_sc.shape, jnp.float32)
        tgt_sc[...] = jnp.zeros(tgt_sc.shape, jnp.float32)

    # --- raw (low precision) matmul on the MXU, f32 accumulation ------------
    # cos_theta * scale is recovered by a per-column scale with scale/||w_c||,
    # which commutes with the contraction over D (so no in-kernel normalize).
    raw = lax.dot_general(
        emb_ref[...], w_ref[...],
        dimension_numbers=(((1,), (1,)), ((), ())),
        preferred_element_type=jnp.float32)                    # (bb, bc)
    logits = jnp.clip(raw * inv_ref[...], clip_lo, clip_hi)    # scale*clip(cos)

    bb, bc = logits.shape
    col0 = ci * bc
    col_ids = col0 + lax.broadcasted_iota(jnp.int32, (bb, bc), 1)
    label = label_ref[...]                                     # (bb, 1) int32
    valid_col = col_ids < num_classes                          # masks class padding
    logits = jnp.where(valid_col, logits, _NEG_BIG)
    target_mask = col_ids == label                             # (bb, bc)
    has_tgt = (label >= col0) & (label < col0 + bc)            # (bb, 1)

    # --- per-ROW margin (exact trig identity for cos(acos(x)+m)) ------------
    t_logit = jnp.sum(jnp.where(target_mask, logits, 0.0), axis=1, keepdims=True)
    t_cos = t_logit * (1.0 / scale)
    sin_t = jnp.sqrt(jnp.maximum(1.0 - t_cos * t_cos, 0.0))
    t_logit_m = scale * (t_cos * cos_m - sin_t * sin_m)        # (bb, 1)

    # --- online softmax accumulation over class tiles ------------------------
    m_prev = m_sc[...]
    m_tile = jnp.max(logits, axis=1, keepdims=True)
    m_tile = jnp.maximum(m_tile, jnp.where(has_tgt, t_logit_m, _NEG_BIG))
    m_new = jnp.maximum(m_prev, m_tile)

    alpha = jnp.exp(m_prev - m_new)
    p_sum = jnp.sum(jnp.exp(logits - m_new), axis=1, keepdims=True)
    # replace the target column's contribution with its margin-adjusted value
    corr = jnp.where(has_tgt,
                     jnp.exp(t_logit_m - m_new) - jnp.exp(t_logit - m_new),
                     0.0)
    l_sc[...] = alpha * l_sc[...] + p_sum + corr
    tgt_sc[...] = tgt_sc[...] + jnp.where(has_tgt, t_logit_m, 0.0)
    m_sc[...] = m_new

    @pl.when(ci == pl.num_programs(1) - 1)
    def _finalize():
        out_ref[...] = m_sc[...] + jnp.log(l_sc[...]) - tgt_sc[...]   # per-row CE


def _round_up(x, m):
    return ((x + m - 1) // m) * m


@functools.partial(
    jax.jit,
    static_argnames=("scale", "margin", "block_b", "block_c", "compute_dtype"))
def arcface_loss(embeddings, weight, label, scale=30.0, margin=0.5, *,
                 block_b=512, block_c=1024, compute_dtype=jnp.bfloat16):
    """embeddings: (B, D); weight: (C, D); label: (B,) int -> scalar f32 loss."""
    B, D = embeddings.shape
    C, Dw = weight.shape
    assert D == Dw
    eps = 1e-8

    # Per-class scale/||w||_2 computed ONCE in the wrapper (f32).  Under jit this
    # fuses with the single pad+cast pass over the weight below.
    w32 = weight.astype(jnp.float32)
    inv = lax.rsqrt(jnp.maximum(jnp.sum(w32 * w32, axis=1), eps * eps))
    scaled_inv = (float(scale) * inv).reshape(1, C)

    # ----- tile sizes (no D padding; full feature dim per block) ------------
    bb = _round_up(min(block_b, _round_up(B, 8)), 8)
    bc = _round_up(min(block_c, _round_up(C, 128)), 128)

    itemsize = jnp.dtype(compute_dtype).itemsize

    def _vmem_est(bb_, bc_):
        return (2 * (bb_ * D + bc_ * D) * itemsize     # double-buffered emb/weight tiles
                + 2 * (bc_ + 2 * bb_) * 4              # inv / label / out blocks
                + 3 * bb_ * 4                          # scratch accumulators
                + 6 * bb_ * bc_ * 4)                   # in-flight (bb, bc) f32 temps

    # Re-derive the VMEM budget per generation-safe cap (v7x has 64 MiB physical).
    while _vmem_est(bb, bc) > _VMEM_CAP and bc > 128:
        bc = max(128, _round_up(bc // 2, 128))
    while _vmem_est(bb, bc) > _VMEM_CAP and bb > 8:
        bb = max(8, _round_up(bb // 2, 8))
    vmem_limit = int(min(_VMEM_CAP, max(32 * 1024 * 1024, 2 * _vmem_est(bb, bc))))

    B_pad = _round_up(B, bb)
    C_pad = _round_up(C, bc)
    num_b = B_pad // bb
    num_c = C_pad // bc

    # Pad + cast in ONE fused pass (no separate full-weight pad traffic); padded
    # classes are masked in-kernel, padded batch rows are sliced off below.
    emb_p = jnp.pad(embeddings, ((0, B_pad - B), (0, 0))).astype(compute_dtype)
    w_p = jnp.pad(weight, ((0, C_pad - C), (0, 0))).astype(compute_dtype)
    inv_p = jnp.pad(scaled_inv, ((0, 0), (0, C_pad - C)))
    lbl_p = jnp.pad(label.astype(jnp.int32), (0, B_pad - B)).reshape(B_pad, 1)

    kernel = functools.partial(
        _arcface_kernel, scale=float(scale), margin=float(margin), num_classes=C)

    cost = pl.CostEstimate(
        flops=int(2 * B_pad * C_pad * D),
        transcendentals=int(B_pad * C_pad),
        bytes_accessed=int(num_b * C_pad * D * itemsize + B_pad * D * itemsize
                           + C_pad * 4 + B_pad * 8))

    per_row = pl.pallas_call(
        kernel,
        out_shape=jax.ShapeDtypeStruct((B_pad, 1), jnp.float32),
        grid_spec=pltpu.PrefetchScalarGridSpec(
            num_scalar_prefetch=0,
            grid=(num_b, num_c),                                 # class axis = reduction
            in_specs=[
                pl.BlockSpec((bb, D), lambda bi, ci: (bi, 0)),   # embeddings (resident per bi)
                pl.BlockSpec((bc, D), lambda bi, ci: (ci, 0)),   # raw weight tile (streamed)
                pl.BlockSpec((1, bc), lambda bi, ci: (0, ci)),   # scale/||w|| per class
                pl.BlockSpec((bb, 1), lambda bi, ci: (bi, 0)),   # labels
            ],
            out_specs=pl.BlockSpec((bb, 1), lambda bi, ci: (bi, 0)),
            scratch_shapes=[
                pltpu.VMEM((bb, 1), jnp.float32),   # running max
                pltpu.VMEM((bb, 1), jnp.float32),   # running sum-exp
                pltpu.VMEM((bb, 1), jnp.float32),   # margin-adjusted target logit
            ],
        ),
        compiler_params=pltpu.CompilerParams(
            dimension_semantics=("parallel", "arbitrary"),
            vmem_limit_bytes=vmem_limit),
        cost_estimate=cost,
    )(emb_p, w_p, inv_p, lbl_p)

    # Mean over the *real* batch rows (F.cross_entropy default reduction).
    return jnp.sum(per_row[:B, 0]) / B


def _reference(embeddings, weight, label, scale=30.0, margin=0.5,
               compute_dtype=None):
    """Pure-JAX reference mirroring the PyTorch module.

    compute_dtype=None  -> exact f32 math (PyTorch-style pre-normalized matmul).
    compute_dtype=bf16  -> precision-matched to the kernel's bf16 streaming path.
    """
    eps = 1e-8
    w32 = weight.astype(jnp.float32)
    inv = 1.0 / jnp.maximum(jnp.linalg.norm(w32, axis=1), eps)
    if compute_dtype is None:
        cos_theta = embeddings.astype(jnp.float32) @ (w32 * inv[:, None]).T
    else:
        e = embeddings.astype(compute_dtype).astype(jnp.float32)
        w = weight.astype(compute_dtype).astype(jnp.float32)
        cos_theta = (e @ w.T) * inv[None, :]
    cos_theta = jnp.clip(cos_theta, -1 + eps, 1 - eps)
    theta = jnp.arccos(cos_theta)
    one_hot = jax.nn.one_hot(label, weight.shape[0], dtype=cos_theta.dtype)
    theta = theta + margin * one_hot
    logits = scale * jnp.cos(theta)
    log_probs = jax.nn.log_softmax(logits, axis=-1)
    return -jnp.mean(jnp.sum(one_hot * log_probs, axis=-1))


if __name__ == "__main__":
    scale, margin = 30.0, 0.5

    def make_inputs(key, B, D, C):
        k_emb, k_w, k_lbl = jax.random.split(key, 3)
        embeddings = jax.random.normal(k_emb, (B, D), dtype=jnp.float32)
        bound = math.sqrt(6.0 / (D + C))  # xavier_uniform_
        weight = jax.random.uniform(k_w, (C, D), minval=-bound, maxval=bound,
                                    dtype=jnp.float32)
        label = jax.random.randint(k_lbl, (B,), 0, C, dtype=jnp.int32)
        return embeddings, weight, label

    k1, k2, k3 = jax.random.split(jax.random.PRNGKey(0), 3)

    # Case 1: module-sized shapes (batch=8, in_features=32, out_features=16),
    # exact f32 compute path vs. f32 reference.
    emb, w, lbl = make_inputs(k1, 8, 32, 16)
    loss = jax.block_until_ready(
        arcface_loss(emb, w, lbl, scale=scale, margin=margin,
                     compute_dtype=jnp.float32))
    ref = _reference(emb, w, lbl, scale, margin)
    assert jnp.allclose(loss, ref, rtol=1e-3, atol=1e-3), (loss, ref)

    # Case 2: unaligned B/D/C with several class tiles — exercises the online
    # softmax accumulation, per-row margin patch, and the padding masks.
    emb, w, lbl = make_inputs(k2, 10, 48, 300)
    loss = jax.block_until_ready(
        arcface_loss(emb, w, lbl, scale=scale, margin=margin,
                     block_c=128, compute_dtype=jnp.float32))
    ref = _reference(emb, w, lbl, scale, margin)
    assert jnp.allclose(loss, ref, rtol=1e-3, atol=1e-3), (loss, ref)

    # Case 3: default bf16 streaming path (halved weight bytes), checked against
    # a precision-matched reference (bf16 matmul inputs, f32 everything else).
    emb, w, lbl = make_inputs(k3, 16, 64, 300)
    loss = jax.block_until_ready(
        arcface_loss(emb, w, lbl, scale=scale, margin=margin))
    ref = _reference(emb, w, lbl, scale, margin, compute_dtype=jnp.bfloat16)
    assert jnp.allclose(loss, ref, rtol=2e-2, atol=2e-2), (loss, ref)

    print("KERNEL_OK")
</pallas_src>

<mosaic_0001>
module attributes {stable_mosaic.version = 11 : i64} {
  func.func @_arcface_kernel(%arg0: i32, %arg1: i32, %arg2: memref<8x32xf32, #tpu.memory_space<vmem>>, %arg3: memref<128x32xf32, #tpu.memory_space<vmem>>, %arg4: memref<1x128xf32, #tpu.memory_space<vmem>>, %arg5: memref<8x1xi32, #tpu.memory_space<vmem>>, %arg6: memref<8x1xf32, #tpu.memory_space<vmem>>, %arg7: memref<8x1xf32, #tpu.memory_space<vmem>>, %arg8: memref<8x1xf32, #tpu.memory_space<vmem>>, %arg9: memref<8x1xf32, #tpu.memory_space<vmem>>) attributes {dimension_semantics = [#tpu.dimension_semantics<parallel>, #tpu.dimension_semantics<arbitrary>], iteration_bounds = array<i64: 1, 1>, scalar_prefetch = 0 : i64, scratch_operands = 3 : i64, tpu.core_type = #tpu.core_type<tc>, window_params = [{transform_indices = @transform_0, window_bounds = array<i64: 8, 32>}, {transform_indices = @transform_1, window_bounds = array<i64: 128, 32>}, {transform_indices = @transform_2, window_bounds = array<i64: 1, 128>}, {transform_indices = @transform_3, window_bounds = array<i64: 8, 1>}, {transform_indices = @transform_4, window_bounds = array<i64: 8, 1>}]} {
    %c0_i32 = arith.constant 0 : i32
    %0 = arith.cmpi eq, %arg1, %c0_i32 : i32
    %1 = arith.extui %0 : i1 to i32
    %c0_i32_0 = arith.constant 0 : i32
    %2 = arith.cmpi ne, %1, %c0_i32_0 : i32
    scf.if %2 {
      %cst_39 = arith.constant -1.000000e+30 : f32
      %84 = vector.broadcast %cst_39 : f32 to vector<8x1xf32>
      %c0_40 = arith.constant 0 : index
      %c0_41 = arith.constant 0 : index
      %85 = vector.load %arg7[%c0_40, %c0_41] : memref<8x1xf32, #tpu.memory_space<vmem>>, vector<8x1xf32>
      tpu.vector_store %arg7[%c0_40, %c0_41], %84 {strides = array<i32>} : memref<8x1xf32, #tpu.memory_space<vmem>>, vector<8x1xf32>,
      %cst_42 = arith.constant 0.000000e+00 : f32
      %86 = vector.broadcast %cst_42 : f32 to vector<8x1xf32>
      %c0_43 = arith.constant 0 : index
      %c0_44 = arith.constant 0 : index
      %87 = vector.load %arg8[%c0_43, %c0_44] : memref<8x1xf32, #tpu.memory_space<vmem>>, vector<8x1xf32>
      tpu.vector_store %arg8[%c0_43, %c0_44], %86 {strides = array<i32>} : memref<8x1xf32, #tpu.memory_space<vmem>>, vector<8x1xf32>,
      %cst_45 = arith.constant 0.000000e+00 : f32
      %88 = vector.broadcast %cst_45 : f32 to vector<8x1xf32>
      %c0_46 = arith.constant 0 : index
      %c0_47 = arith.constant 0 : index
      %89 = vector.load %arg9[%c0_46, %c0_47] : memref<8x1xf32, #tpu.memory_space<vmem>>, vector<8x1xf32>
      tpu.vector_store %arg9[%c0_46, %c0_47], %88 {strides = array<i32>} : memref<8x1xf32, #tpu.memory_space<vmem>>, vector<8x1xf32>,
    } else {
    }
    %c0 = arith.constant 0 : index
    %c0_1 = arith.constant 0 : index
    %3 = vector.load %arg2[%c0, %c0_1] : memref<8x32xf32, #tpu.memory_space<vmem>>, vector<8x32xf32>
    %c0_2 = arith.constant 0 : index
    %c0_3 = arith.constant 0 : index
    %4 = vector.load %arg3[%c0_2, %c0_3] : memref<128x32xf32, #tpu.memory_space<vmem>>, vector<128x32xf32>
    %cst = arith.constant dense<0.000000e+00> : vector<8x128xf32>
    %5 = tpu.matmul %3, %4, %cst {dimension_numbers = #tpu.dot_dimension_numbers<[1], [1], [0], [0], [0, 0, 1, 0], [], []>} : vector<8x32xf32>, vector<128x32xf32>, vector<8x128xf32> -> vector<8x128xf32>
    %c0_4 = arith.constant 0 : index
    %c0_5 = arith.constant 0 : index
    %6 = vector.load %arg4[%c0_4, %c0_5] : memref<1x128xf32, #tpu.memory_space<vmem>>, vector<1x128xf32>
    %7 = vector.broadcast %6 : vector<1x128xf32> to vector<8x128xf32>
    %8 = arith.mulf %5, %7 : vector<8x128xf32>
    %cst_6 = arith.constant -3.000000e+01 : f32
    %cst_7 = arith.constant 3.000000e+01 : f32
    %9 = vector.broadcast %cst_6 : f32 to vector<8x128xf32>
    %10 = arith.maximumf %9, %8 : vector<8x128xf32>
    %11 = vector.broadcast %cst_7 : f32 to vector<8x128xf32>
    %12 = arith.minimumf %11, %10 : vector<8x128xf32>
    %c128_i32 = arith.constant 128 : i32
    %13 = arith.muli %arg1, %c128_i32 : i32
    %14 = tpu.iota {dimensions = array<i32: 1>} : vector<8x128xi32>
    %15 = vector.broadcast %13 : i32 to vector<8x128xi32>
    %16 = arith.addi %15, %14 : vector<8x128xi32>
    %c0_8 = arith.constant 0 : index
    %c0_9 = arith.constant 0 : index
    %17 = vector.load %arg5[%c0_8, %c0_9] : memref<8x1xi32, #tpu.memory_space<vmem>>, vector<8x1xi32>
    %c16_i32 = arith.constant 16 : i32
    %18 = vector.broadcast %c16_i32 : i32 to vector<8x128xi32>
    %19 = arith.cmpi slt, %16, %18 : vector<8x128xi32>
    %cst_10 = arith.constant -1.000000e+30 : f32
    %20 = vector.broadcast %cst_10 : f32 to vector<8x128xf32>
    %21 = arith.select %19, %12, %20 : vector<8x128xi1>, vector<8x128xf32>
    %22 = vector.broadcast %17 : vector<8x1xi32> to vector<8x128xi32>
    %23 = arith.cmpi eq, %16, %22 : vector<8x128xi32>
    %24 = vector.broadcast %13 : i32 to vector<8x1xi32>
    %25 = arith.cmpi sge, %17, %24 : vector<8x1xi32>
    %c128_i32_11 = arith.constant 128 : i32
    %26 = arith.addi %13, %c128_i32_11 : i32
    %27 = vector.broadcast %26 : i32 to vector<8x1xi32>
    %28 = arith.cmpi slt, %17, %27 : vector<8x1xi32>
    %29 = arith.andi %25, %28 : vector<8x1xi1>
    %cst_12 = arith.constant 0.000000e+00 : f32
    %30 = vector.broadcast %cst_12 : f32 to vector<8x128xf32>
    %31 = arith.select %23, %21, %30 : vector<8x128xi1>, vector<8x128xf32>
    %cst_13 = arith.constant dense<0.000000e+00> : vector<8xf32>
    %32 = vector.multi_reduction <add>, %31, %cst_13 [1] : vector<8x128xf32> to vector<8xf32>
    %33 = vector.shape_cast %32 : vector<8xf32> to vector<8x1xf32>
    %cst_14 = arith.constant 0.0333333351 : f32
    %34 = vector.broadcast %cst_14 : f32 to vector<8x1xf32>
    %35 = arith.mulf %33, %34 : vector<8x1xf32>
    %36 = arith.mulf %35, %35 : vector<8x1xf32>
    %cst_15 = arith.constant 1.000000e+00 : f32
    %37 = vector.broadcast %cst_15 : f32 to vector<8x1xf32>
    %38 = arith.subf %37, %36 : vector<8x1xf32>
    %cst_16 = arith.constant 0.000000e+00 : f32
    %39 = vector.broadcast %cst_16 : f32 to vector<8x1xf32>
    %40 = arith.maximumf %38, %39 : vector<8x1xf32>
    %41 = math.sqrt %40 : vector<8x1xf32>
    %cst_17 = arith.constant 0.87758255 : f32
    %42 = vector.broadcast %cst_17 : f32 to vector<8x1xf32>
    %43 = arith.mulf %35, %42 : vector<8x1xf32>
    %cst_18 = arith.constant 0.47942555 : f32
    %44 = vector.broadcast %cst_18 : f32 to vector<8x1xf32>
    %45 = arith.mulf %41, %44 : vector<8x1xf32>
    %46 = arith.subf %43, %45 : vector<8x1xf32>
    %cst_19 = arith.constant 3.000000e+01 : f32
    %47 = vector.broadcast %cst_19 : f32 to vector<8x1xf32>
    %48 = arith.mulf %47, %46 : vector<8x1xf32>
    %c0_20 = arith.constant 0 : index
    %c0_21 = arith.constant 0 : index
    %49 = vector.load %arg7[%c0_20, %c0_21] : memref<8x1xf32, #tpu.memory_space<vmem>>, vector<8x1xf32>
    %cst_22 = arith.constant dense<0xFF800000> : vector<8xf32>
    %50 = vector.multi_reduction <maximumf>, %21, %cst_22 [1] : vector<8x128xf32> to vector<8xf32>
    %51 = vector.shape_cast %50 : vector<8xf32> to vector<8x1xf32>
    %cst_23 = arith.constant -1.000000e+30 : f32
    %52 = vector.broadcast %cst_23 : f32 to vector<8x1xf32>
    %53 = arith.select %29, %48, %52 : vector<8x1xi1>, vector<8x1xf32>
    %54 = arith.maximumf %51, %53 : vector<8x1xf32>
    %55 = arith.maximumf %49, %54 : vector<8x1xf32>
    %56 = arith.subf %49, %55 : vector<8x1xf32>
    %57 = math.exp %56 : vector<8x1xf32>
    %58 = vector.broadcast %55 : vector<8x1xf32> to vector<8x128xf32>
    %59 = arith.subf %21, %58 : vector<8x128xf32>
    %60 = math.exp %59 : vector<8x128xf32>
    %cst_24 = arith.constant dense<0.000000e+00> : vector<8xf32>
    %61 = vector.multi_reduction <add>, %60, %cst_24 [1] : vector<8x128xf32> to vector<8xf32>
    %62 = vector.shape_cast %61 : vector<8xf32> to vector<8x1xf32>
    %63 = arith.subf %48, %55 : vector<8x1xf32>
    %64 = math.exp %63 : vector<8x1xf32>
    %65 = arith.subf %33, %55 : vector<8x1xf32>
    %66 = math.exp %65 : vector<8x1xf32>
    %67 = arith.subf %64, %66 : vector<8x1xf32>
    %cst_25 = arith.constant 0.000000e+00 : f32
    %68 = vector.broadcast %cst_25 : f32 to vector<8x1xf32>
    %69 = arith.select %29, %67, %68 : vector<8x1xi1>, vector<8x1xf32>
    %c0_26 = arith.constant 0 : index
    %c0_27 = arith.constant 0 : index
    %70 = vector.load %arg8[%c0_26, %c0_27] : memref<8x1xf32, #tpu.memory_space<vmem>>, vector<8x1xf32>
    %71 = arith.mulf %57, %70 : vector<8x1xf32>
    %72 = arith.addf %71, %62 : vector<8x1xf32>
    %73 = arith.addf %72, %69 : vector<8x1xf32>
    %c0_28 = arith.constant 0 : index
    %c0_29 = arith.constant 0 : index
    %74 = vector.load %arg8[%c0_28, %c0_29] : memref<8x1xf32, #tpu.memory_space<vmem>>, vector<8x1xf32>
    tpu.vector_store %arg8[%c0_28, %c0_29], %73 {strides = array<i32>} : memref<8x1xf32, #tpu.memory_space<vmem>>, vector<8x1xf32>,
    %c0_30 = arith.constant 0 : index
    %c0_31 = arith.constant 0 : index
    %75 = vector.load %arg9[%c0_30, %c0_31] : memref<8x1xf32, #tpu.memory_space<vmem>>, vector<8x1xf32>
    %cst_32 = arith.constant 0.000000e+00 : f32
    %76 = vector.broadcast %cst_32 : f32 to vector<8x1xf32>
    %77 = arith.select %29, %48, %76 : vector<8x1xi1>, vector<8x1xf32>
    %78 = arith.addf %75, %77 : vector<8x1xf32>
    %c0_33 = arith.constant 0 : index
    %c0_34 = arith.constant 0 : index
    %79 = vector.load %arg9[%c0_33, %c0_34] : memref<8x1xf32, #tpu.memory_space<vmem>>, vector<8x1xf32>
    tpu.vector_store %arg9[%c0_33, %c0_34], %78 {strides = array<i32>} : memref<8x1xf32, #tpu.memory_space<vmem>>, vector<8x1xf32>,
    %c0_35 = arith.constant 0 : index
    %c0_36 = arith.constant 0 : index
    %80 = vector.load %arg7[%c0_35, %c0_36] : memref<8x1xf32, #tpu.memory_space<vmem>>, vector<8x1xf32>
    tpu.vector_store %arg7[%c0_35, %c0_36], %55 {strides = array<i32>} : memref<8x1xf32, #tpu.memory_space<vmem>>, vector<8x1xf32>,
    %c0_i32_37 = arith.constant 0 : i32
    %81 = arith.cmpi eq, %arg1, %c0_i32_37 : i32
    %82 = arith.extui %81 : i1 to i32
    %c0_i32_38 = arith.constant 0 : i32
    %83 = arith.cmpi ne, %82, %c0_i32_38 : i32
    scf.if %83 {
      %c0_39 = arith.constant 0 : index
      %c0_40 = arith.constant 0 : index
      %84 = vector.load %arg7[%c0_39, %c0_40] : memref<8x1xf32, #tpu.memory_space<vmem>>, vector<8x1xf32>
      %c0_41 = arith.constant 0 : index
      %c0_42 = arith.constant 0 : index
      %85 = vector.load %arg8[%c0_41, %c0_42] : memref<8x1xf32, #tpu.memory_space<vmem>>, vector<8x1xf32>
      %86 = math.log %85 : vector<8x1xf32>
      %87 = arith.addf %84, %86 : vector<8x1xf32>
      %c0_43 = arith.constant 0 : index
      %c0_44 = arith.constant 0 : index
      %88 = vector.load %arg9[%c0_43, %c0_44] : memref<8x1xf32, #tpu.memory_space<vmem>>, vector<8x1xf32>
      %89 = arith.subf %87, %88 : vector<8x1xf32>
      %c0_45 = arith.constant 0 : index
      %c0_46 = arith.constant 0 : index
      %90 = vector.load %arg6[%c0_45, %c0_46] : memref<8x1xf32, #tpu.memory_space<vmem>>, vector<8x1xf32>
      tpu.vector_store %arg6[%c0_45, %c0_46], %89 {strides = array<i32>} : memref<8x1xf32, #tpu.memory_space<vmem>>, vector<8x1xf32>,
    } else {
    }
    return
  }
  func.func @transform_0(%arg0: i32, %arg1: i32) -> (i32, i32) {
    %c0_i32 = arith.constant 0 : i32
    %c0_i32_0 = arith.constant 0 : i32
    return %arg0, %c0_i32 : i32, i32
  }
  func.func @transform_1(%arg0: i32, %arg1: i32) -> (i32, i32) {
    %c0_i32 = arith.constant 0 : i32
    %c0_i32_0 = arith.constant 0 : i32
    return %arg1, %c0_i32 : i32, i32
  }
  func.func @transform_2(%arg0: i32, %arg1: i32) -> (i32, i32) {
    %c0_i32 = arith.constant 0 : i32
    %c0_i32_0 = arith.constant 0 : i32
    return %c0_i32, %arg1 : i32, i32
  }
  func.func @transform_3(%arg0: i32, %arg1: i32) -> (i32, i32) {
    %c0_i32 = arith.constant 0 : i32
    %c0_i32_0 = arith.constant 0 : i32
    return %arg0, %c0_i32 : i32, i32
  }
  func.func @transform_4(%arg0: i32, %arg1: i32) -> (i32, i32) {
    %c0_i32 = arith.constant 0 : i32
    %c0_i32_0 = arith.constant 0 : i32
    return %arg0, %c0_i32 : i32, i32
  }
}

</mosaic_0001>

<llo_original>
// kernel: arcface_loss.1
$region0: #{arcface_loss.1}
  #allocation0 [shape = 'u32[]', space=smem, size = 0x4, offset = 0x4, fixed_abs, tag = 'smem constant byte address 0x4 - core index']
  #allocation1 [shape = 'u32[144,128]{1,0:T(1,128)}', space=vmem, size = 0x12000, scoped, tag = 'internal scratch']
  #allocation2 [shape = 'f32[8,1]{1,0:T(8,128)}', space=vmem, size = 0x1000, scoped, tag = 'scratch operand']
  #allocation3 [shape = 'f32[8,1]{1,0:T(8,128)}', space=vmem, size = 0x1000, scoped, tag = 'scratch operand']
  #allocation4 [shape = 'f32[8,1]{1,0:T(8,128)}', space=vmem, size = 0x1000, scoped, tag = 'scratch operand']
  %s0 = inlined_call_operand.vmem [shape: f32[8,32], index: 0, kind: input, shape index: {}]
  %s1 = inlined_call_operand.vmem [shape: f32[128,32], index: 1, kind: input, shape index: {}]
  %s2 = inlined_call_operand.vmem [shape: f32[1,128], index: 2, kind: input, shape index: {}]
  %s3 = inlined_call_operand.vmem [shape: s32[8,1], index: 3, kind: input, shape index: {}]
  %s4 = inlined_call_operand.vmem [shape: f32[8,1], index: 4, kind: output, shape index: {}]
  %s5 = sld [smem:[#allocation0]]
  $region34: #{arcface_loss.1} parent=0
    _
  %s7 = ssub.s32 1, %s5
  %s8 = scalar_select 0, %s7, %s5
  // Predicated region
  $region2: #{arcface_loss.1} parent=0 // pred_check
    _
  $region3: #{arcface_loss.1} parent=0 // pred_check_branch
    %10 = sbr.rel (0) target = $region5
  $region4: #{arcface_loss.1} parent=0 // pred_region
    _
  $region5: #{arcface_loss.1} parent=0 // pred_fallthru
    _
  // Predicated region
  $region6: #{arcface_loss.1} parent=0 // pred_check
    _
  $region7: #{arcface_loss.1} parent=0 // pred_check_branch
    %12 = sbr.rel (0) target = $region9
  $region8: #{arcface_loss.1} parent=0 // pred_region
    _
  $region9: #{arcface_loss.1} parent=0 // pred_fallthru
    _
  // Predicated region
  $region10: #{arcface_loss.1} parent=0 // pred_check
    _
  $region11: #{arcface_loss.1} parent=0 // pred_check_branch
    %14 = sbr.rel (0) target = $region13
  $region12: #{arcface_loss.1} parent=0 // pred_region
    _
  $region13: #{arcface_loss.1} parent=0 // pred_fallthru
    _
  // Predicated region
  $region14: #{arcface_loss.1} parent=0 // pred_check
    _
  $region15: #{arcface_loss.1} parent=0 // pred_check_branch
    %16 = sbr.rel (0) target = $region17
  $region16: #{arcface_loss.1} parent=0 // pred_region
    _
  $region17: #{arcface_loss.1} parent=0 // pred_fallthru
    _
  %p17 = scmp.eq.s32.totalorder 0, 0
  // Predicated region
  $region18: #{arcface_loss.1} parent=0 // pred_check
    %p18 = pneg %p17
  $region19: #{arcface_loss.1} parent=0 // pred_check_branch
    %20 = sbr.rel (%p18) target = $region21
  $region20: #{arcface_loss.1} parent=0 // pred_region
    %vm21 = vcmask 7168
    %22 = vst.msk [vmem:[#allocation2] sm:$0xff] %vm21, -1e+30
    %23 = vst.msk [vmem:[#allocation3] sm:$0xff] %vm21, 0.0
    %24 = vst.msk [vmem:[#allocation4] sm:$0xff] %vm21, 0.0
  $region21: #{arcface_loss.1} parent=0 // pred_fallthru
    _
  %v25 = vld [vmem:[%s0] sm:$0xff]
  %v26 = vld [vmem:[%s1] sm:$0xff]
  %v27 = vld [vmem:[%s1 + $0x8] sm:$0xff]
  %v28 = vld [vmem:[%s1 + $0x10] sm:$0xff]
  %v29 = vld [vmem:[%s1 + $0x18] sm:$0xff]
  %v30 = vld [vmem:[%s1 + $0x20] sm:$0xff]
  %v31 = vld [vmem:[%s1 + $0x28] sm:$0xff]
  %v32 = vld [vmem:[%s1 + $0x30] sm:$0xff]
  %v33 = vld [vmem:[%s1 + $0x38] sm:$0xff]
  %v34 = vld [vmem:[%s1 + $0x40] sm:$0xff]
  %v35 = vld [vmem:[%s1 + $0x48] sm:$0xff]
  %v36 = vld [vmem:[%s1 + $0x50] sm:$0xff]
  %v37 = vld [vmem:[%s1 + $0x58] sm:$0xff]
  %v38 = vld [vmem:[%s1 + $0x60] sm:$0xff]
  %v39 = vld [vmem:[%s1 + $0x68] sm:$0xff]
  %v40 = vld [vmem:[%s1 + $0x70] sm:$0xff]
  %v41 = vld [vmem:[%s1 + $0x78] sm:$0xff]
  %vm42 = vcmask 261120
  %v44 = vsel %vm42, %v25, 0
  %v47 = vsel %vm42, %v26, 0
  %v50 = vsel %vm42, %v27, 0
  %v53 = vsel %vm42, %v28, 0
  %v56 = vsel %vm42, %v29, 0
  %v59 = vsel %vm42, %v30, 0
  %v62 = vsel %vm42, %v31, 0
  %v65 = vsel %vm42, %v32, 0
  %v68 = vsel %vm42, %v33, 0
  %v71 = vsel %vm42, %v34, 0
  %v74 = vsel %vm42, %v35, 0
  %v77 = vsel %vm42, %v36, 0
  %v80 = vsel %vm42, %v37, 0
  %v83 = vsel %vm42, %v38, 0
  %v86 = vsel %vm42, %v39, 0
  %v89 = vsel %vm42, %v40, 0
  %v92 = vsel %vm42, %v41, 0
  %94 = vmatprep.subr.mxu0 0.0
  %95 = vmatpush1.xpose.msra.mxu0 %v47
  %96 = vmatprep.subr.mxu0 0.0
  %97 = vmatpush1.xpose.msra.mxu0 %v50
  %98 = vmatprep.subr.mxu0 0.0
  %99 = vmatpush1.xpose.msra.mxu0 %v53
  %100 = vmatprep.subr.mxu0 0.0
  %101 = vmatpush1.xpose.msra.mxu0 %v56
  %102 = vmatprep.subr.mxu0 0.0
  %103 = vmatpush1.xpose.msra.mxu0 %v59
  %104 = vmatprep.subr.mxu0 0.0
  %105 = vmatpush1.xpose.msra.mxu0 %v62
  %106 = vmatprep.subr.mxu0 0.0
  %107 = vmatpush1.xpose.msra.mxu0 %v65
  %108 = vmatprep.subr.mxu0 0.0
  %109 = vmatpush1.xpose.msra.mxu0 %v68
  %110 = vmatprep.subr.mxu0 0.0
  %111 = vmatpush1.xpose.msra.mxu0 %v71
  %112 = vmatprep.subr.mxu0 0.0
  %113 = vmatpush1.xpose.msra.mxu0 %v74
  %114 = vmatprep.subr.mxu0 0.0
  %115 = vmatpush1.xpose.msra.mxu0 %v77
  %116 = vmatprep.subr.mxu0 0.0
  %117 = vmatpush1.xpose.msra.mxu0 %v80
  %118 = vmatprep.subr.mxu0 0.0
  %119 = vmatpush1.xpose.msra.mxu0 %v83
  %120 = vmatprep.subr.mxu0 0.0
  %121 = vmatpush1.xpose.msra.mxu0 %v86
  %122 = vmatprep.subr.mxu0 0.0
  %123 = vmatpush1.xpose.msra.mxu0 %v89
  %124 = vmatprep.subr.mxu0 0.0
  %125 = vmatpush1.xpose.msra.mxu0 %v92
  %126 = vmatprep.subr.mxu0 0.0
  %127 = vmatpush1.xpose.msra.mxu0 0.0
  %128 = vmatprep.subr.mxu0 0.0
  %129 = vmatpush1.xpose.msra.mxu0 0.0
  %130 = vmatprep.subr.mxu0 0.0
  %131 = vmatpush1.xpose.msra.mxu0 0.0
  %132 = vmatprep.subr.mxu0 0.0
  %133 = vmatpush1.xpose.msra.mxu0 0.0
  %134 = vmatprep.subr.mxu0 0.0
  %135 = vmatpush1.xpose.msra.mxu0 0.0
  %136 = vmatprep.subr.mxu0 0.0
  %137 = vmatpush1.xpose.msra.mxu0 0.0
  %138 = vmatprep.subr.mxu0 0.0
  %139 = vmatpush1.xpose.msra.mxu0 0.0
  %140 = vmatprep.subr.mxu0 0.0
  %141 = vmatpush1.xpose.msra.mxu0 0.0
  %142 = vmatprep.subr.mxu0 0.0
  %143 = vmatpush1.xpose.msra.mxu0 0.0
  %144 = vmatprep.subr.mxu0 0.0
  %145 = vmatpush1.xpose.msra.mxu0 0.0
  %146 = vmatprep.subr.mxu0 0.0
  %147 = vmatpush1.xpose.msra.mxu0 0.0
  %148 = vmatprep.subr.mxu0 0.0
  %149 = vmatpush1.xpose.msra.mxu0 0.0
  %150 = vmatprep.subr.mxu0 0.0
  %151 = vmatpush1.xpose.msra.mxu0 0.0
  %152 = vmatprep.subr.mxu0 0.0
  %153 = vmatpush1.xpose.msra.mxu0 0.0
  %154 = vmatprep.subr.mxu0 0.0
  %155 = vmatpush1.xpose.msra.mxu0 0.0
  %156 = vmatprep.subr.mxu0 0.0
  %157 = vmatpush1.xpose.msra.mxu0 0.0
  %158 = vmatprep.mubr.f32.mxu0 0.0
  %159 = vmatmul.mubr.f32.gmra.mrb[0].mxu0 %v44
  %v160 = vpop.f32.mrb[0].mxu0
  %v161 = vadd.f32 0.0, %v160
  %v162 = vpop.f32.mrb[0].mxu0
  %163 = vdwg.mxu0
  %v164 = vld [vmem:[%s2] sm:$0x1]
  %v166 = vlaneseq
  %v167 = vshrl.u32 %v166, 7
  %v168 = vsub.s32 0, %v167
  %v169 = vrot.slane %v164, %v168
  %v171 = vmul.f32 %v161, %v169
  %v172 = vmax.f32 %v171, -30.0
  %v173 = vmin.f32 %v172, 30.0
  %s174 = smul.u32 0, 128
  %v175 = vlaneseq
  %v176 = vand.u32 %v175, 127
  %v177 = vstv %s174
  %v178 = vadd.s32 %v177, %v176
  %v179 = vld [vmem:[%s3] sm:$0xff]
  %vm180 = vcmp.lt.s32.totalorder %v178, 16
  %v181 = vsel %vm180, %v173, -1e+30
  %182 = vset.pattern.permute.xlu0 0
  %183 = vperm.xlu0 %182, %v179
  %v184 = vpop.permute.xlu0 %183
  %vm185 = vcmp.eq.s32.totalorder %v178, %v184
  %vm186 = vcmp.ge.s32.totalorder %v179, %v177
  %s187 = sadd.s32 %s174, 128
  %v188 = vstv %s187
  %vm189 = vcmp.lt.s32.totalorder %v179, %v188
  %vm190 = vmand %vm186, %vm189
  %v191 = vsel %vm185, %v181, 0.0
  %192 = vadd.xlane.f32.xlu0 %v191
  %v193 = vpop.xlane.xlu0 %192
  %v194 = vmul.f32 %v193, 0.033333335
  %v195 = vmul.f32 %v194, %v194
  %v196 = vsub.f32 1.0, %v195
  %v197 = vmax.f32 %v196, 0.0
  %v198 = vrsqrt.pop %v197
  %v199 = vmul.f32 %v197, %v198
  %vm200 = vcmp.eq.f32.partialorder %v197, inf
  %v201 = vsel %vm200, %v197, %v199
  %vm202 = vcmp.eq.f32.partialorder %v197, 0.0
  %v203 = vand.u32 %v197, 2147483648
  %v204 = vsel %vm202, %v203, %v201
  %v205 = vmul.f32 %v194, 0.87758255
  %v206 = vmul.f32 %v204, 0.47942555
  %v207 = vsub.f32 %v205, %v206
  %v208 = vmul.f32 %v207, 30.0
  %v209 = vld [vmem:[#allocation2] sm:$0xff]
  %210 = vmax.xlane.f32.xlu0 %v181
  %v211 = vpop.xlane.xlu0 %210
  %v212 = vsel %vm190, %v208, -1e+30
  %v213 = vmax.f32 %v211, %v212
  %v214 = vmax.f32 %v209, %v213
  %v215 = vsub.f32 %v209, %v214
  %v216 = vmul.f32 %v215, 1.442695
  %v217 = vpow.pop %v216
  %219 = vset.pattern.permute.xlu0 0
  %220 = vperm.xlu0 %219, %v214
  %v221 = vpop.permute.xlu0 %220
  %v223 = vsub.f32 %v181, %v221
  %v224 = vmul.f32 %v223, 1.442695
  %v225 = vpow.pop %v224
  %226 = vadd.xlane.f32.xlu0 %v225
  %v227 = vpop.xlane.xlu0 %226
  %v228 = vsub.f32 %v208, %v214
  %v229 = vmul.f32 %v228, 1.442695
  %v230 = vpow.pop %v229
  %v231 = vsub.f32 %v193, %v214
  %v232 = vmul.f32 %v231, 1.442695
  %v233 = vpow.pop %v232
  %v234 = vsub.f32 %v230, %v233
  %v235 = vsel %vm190, %v234, 0.0
  %v236 = vld [vmem:[#allocation3] sm:$0xff]
  %v237 = vmul.f32 %v217, %v236
  %v238 = vadd.f32 %v237, %v227
  %v239 = vadd.f32 %v238, %v235
  %vm240 = vcmask 7168
  %241 = vst.msk [vmem:[#allocation3] sm:$0xff] %vm240, %v239
  %v242 = vld [vmem:[#allocation4] sm:$0xff]
  %v243 = vsel %vm190, %v208, 0.0
  %v244 = vadd.f32 %v242, %v243
  %245 = vst.msk [vmem:[#allocation4] sm:$0xff] %vm240, %v244
  %246 = vst.msk [vmem:[#allocation2] sm:$0xff] %vm240, %v214
  // Predicated region
  $region22: #{arcface_loss.1} parent=0 // pred_check
    %p247 = pneg %p17
  $region23: #{arcface_loss.1} parent=0 // pred_check_branch
    %249 = sbr.rel (%p247) target = $region25
  $region24: #{arcface_loss.1} parent=0 // pred_region
    %v250 = vld [vmem:[#allocation2] sm:$0xff]
    %v251 = vld [vmem:[#allocation3] sm:$0xff]
    %v252 = vlog2.pop %v251
    %v253 = vmul.f32 %v252, 0.6931472
    %v254 = vadd.f32 %v250, %v253
    %v255 = vld [vmem:[#allocation4] sm:$0xff]
    %v256 = vsub.f32 %v254, %v255
    %257 = vst.msk [vmem:[%s4] sm:$0xff] %vm240, %v256
  $region25: #{arcface_loss.1} parent=0 // pred_fallthru
    _
  // Predicated region
  $region26: #{arcface_loss.1} parent=0 // pred_check
    _
  $region27: #{arcface_loss.1} parent=0 // pred_check_branch
    %259 = sbr.rel (0) target = $region29
  $region28: #{arcface_loss.1} parent=0 // pred_region
    _
  $region29: #{arcface_loss.1} parent=0 // pred_fallthru
    _
  // Predicated region
  $region30: #{arcface_loss.1} parent=0 // pred_check
    _
  $region31: #{arcface_loss.1} parent=0 // pred_check_branch
    %261 = sbr.rel (0) target = $region33
  $region32: #{arcface_loss.1} parent=0 // pred_region
    _
  $region33: #{arcface_loss.1} parent=0 // pred_fallthru
    _

</llo_original>
